<compile_context>
chip_gen: v6e
topology: v6e:2x2x1
jax: 0.10.0
libtpu: 0.0.40
codegen_flags: <defaults>
</compile_context>

<pallas_src>
import jax
import jax.numpy as jnp
from jax.experimental import pallas as pl
from jax.experimental.pallas import tpu as pltpu


def _make_kernel(L, K, CPS, CB):
    """Build the fused residual-block kernel for a fixed tiling.

    Block layout per grid step:
      x_ref:  (CPS, C_in, CB*L)   CPS chunks of CB batch elements, lane-dense
      w1_ref: (C_out, K*C_in)     conv1 weight, BN1 scale folded, k-major
      b1_ref: (C_out, 1)          conv1 bias + BN1 shift (f32)
      w2_ref: (C_out, K*C_out)    conv2 weight, BN2 scale folded, k-major
      b2_ref: (C_out, 1)          conv2 bias + BN2 shift (f32)
      o_ref:  (CPS, C_out, CB*L)
    """
    CH = CB * L
    pad = (K - 1) // 2

    def kernel(x_ref, w1_ref, b1_ref, w2_ref, b2_ref, o_ref):
        C_in = x_ref.shape[1]
        C_out = o_ref.shape[1]
        compute_dt = w1_ref.dtype          # bf16 on the fast MXU path

        # ---- hoisted constants (once per grid step, reused by every chunk) ----
        # Halo masks: zero out lanes that would read across a batch-element
        # boundary for shift d. Identical for both convs (C_in == C_out).
        lane = jax.lax.broadcasted_iota(jnp.int32, (C_in, CH), 1) % L
        masks = {}
        for k in range(K):
            d = k - pad
            if d != 0:
                shifted = lane + d
                masks[d] = jnp.logical_and(shifted >= 0, shifted < L).astype(jnp.float32)

        w1 = w1_ref[...]
        w2 = w2_ref[...]
        b1 = jnp.broadcast_to(b1_ref[...], (C_out, CH))   # hoisted broadcast
        b2 = jnp.broadcast_to(b2_ref[...], (C_out, CH))

        def shift_stack(a):
            # a: (C, CH) f32 -> im2col operand (K*C, CH):
            # row k*C + c holds a[c, j + (k - pad)], zero outside each
            # batch element's [0, L) window.
            pieces = []
            for k in range(K):
                d = k - pad
                if d == 0:
                    pieces.append(a)
                else:
                    s = pltpu.roll(a, (-d) % CH, 1)        # s[:, j] = a[:, j + d]
                    pieces.append(s * masks[d])
            return jnp.concatenate(pieces, axis=0)

        def body(c, carry):
            x = x_ref[c].astype(jnp.float32)               # (C_in, CH)

            # conv1 ('same') + BN1 + ReLU  — one MXU matmul, scale pre-folded
            xs = shift_stack(x).astype(compute_dt)         # (K*C_in, CH)
            h = jnp.maximum(
                jnp.dot(w1, xs, preferred_element_type=jnp.float32) + b1, 0.0)

            # conv2 ('same') + BN2 + residual add + ReLU (epilogue kept f32)
            hs = shift_stack(h).astype(compute_dt)         # (K*C_out, CH)
            out = jnp.maximum(
                jnp.dot(w2, hs, preferred_element_type=jnp.float32) + b2 + x, 0.0)

            o_ref[c] = out.astype(o_ref.dtype)
            return carry

        jax.lax.fori_loop(0, CPS, body, 0, unroll=False)

    return kernel


def residual_block(x, w1, b1, g1, beta1, m1, v1,
                   w2, b2, g2, beta2, m2, v2,
                   eps=1e-5, mxu_dtype=jnp.float32,
                   target_chunk_lanes=512, target_block_lanes=16384):
    """Fused ResidualBlock forward (eval-mode BN), Pallas TPU kernel."""
    N, C_in, L = x.shape
    C_out, C_in_w, K = w1.shape
    assert C_in_w == C_in
    # downsample=None in the module => residual add requires matching channels.
    assert C_in == C_out, "downsample branch not implemented; requires C_in == C_out"

    # ---- fold eval-mode BatchNorm into the convs ----
    #   y = s*(conv(x) + bias - mean) + beta = conv_{s*w}(x) + (s*(bias-mean) + beta)
    s1 = g1 / jnp.sqrt(v1 + eps)
    s2 = g2 / jnp.sqrt(v2 + eps)
    # k-major im2col weight layout matching the in-kernel stacking:
    #   w_flat[o, k*C + c] = s[o] * w[o, c, k]
    w1f = (s1[:, None, None] * jnp.transpose(w1, (0, 2, 1))).reshape(C_out, K * C_in)
    w2f = (s2[:, None, None] * jnp.transpose(w2, (0, 2, 1))).reshape(C_out, K * C_out)
    w1f = w1f.astype(mxu_dtype)
    w2f = w2f.astype(mxu_dtype)
    sh1 = (s1 * (b1 - m1) + beta1).astype(jnp.float32)[:, None]
    sh2 = (s2 * (b2 - m2) + beta2).astype(jnp.float32)[:, None]

    # ---- tiling: big DMA blocks, bounded vreg chunks ----
    CB = max(1, min(N, target_chunk_lanes // max(L, 1)))   # batch elems per chunk
    CH = CB * L                                             # lanes per chunk
    CPS = max(1, target_block_lanes // CH)                  # chunks per grid step
    # Keep >= 2 grid steps when possible so v7x's two TensorCores both get work.
    while CPS > 1 and -(-N // (CPS * CB)) < 2:
        CPS //= 2
    TB = CPS * CB                                            # batch elems per grid step
    n_steps = -(-N // TB)
    N_pad = n_steps * TB

    # Pad awkward batch sizes (zero batch elements; results are sliced off).
    xp = x if N_pad == N else jnp.pad(x, ((0, N_pad - N), (0, 0), (0, 0)))

    # Lane-dense slab layout: (G, C, CB*L), G = N_pad / CB. Wrapper-side
    # transpose is cheap layout plumbing; it buys contiguous, unmasked DMAs.
    G = N_pad // CB
    x3 = xp.reshape(G, CB, C_in, L).transpose(0, 2, 1, 3).reshape(G, C_in, CH)

    kernel = _make_kernel(L, K, CPS, CB)

    grid_spec = pltpu.PrefetchScalarGridSpec(
        num_scalar_prefetch=0,
        grid=(n_steps,),
        in_specs=[
            pl.BlockSpec((CPS, C_in, CH), lambda i: (i, 0, 0)),      # x slab
            pl.BlockSpec((C_out, K * C_in), lambda i: (0, 0)),       # w1 (folded)
            pl.BlockSpec((C_out, 1), lambda i: (0, 0)),              # shift1
            pl.BlockSpec((C_out, K * C_out), lambda i: (0, 0)),      # w2 (folded)
            pl.BlockSpec((C_out, 1), lambda i: (0, 0)),              # shift2
        ],
        out_specs=pl.BlockSpec((CPS, C_out, CH), lambda i: (i, 0, 0)),
    )

    out3 = pl.pallas_call(
        kernel,
        out_shape=jax.ShapeDtypeStruct((G, C_out, CH), x.dtype),
        grid_spec=grid_spec,
        compiler_params=pltpu.CompilerParams(dimension_semantics=("parallel",)),
    )(x3, w1f, sh1, w2f, sh2)

    out = out3.reshape(G, C_out, CB, L).transpose(0, 2, 1, 3).reshape(N_pad, C_out, L)
    return out[:N]


# ---------------- pure-JAX reference (for correctness check) ----------------
def _conv1d_same_ref(x, w, b):
    K = w.shape[2]
    pad_l = (K - 1) // 2
    pad_r = (K - 1) - pad_l
    out = jax.lax.conv_general_dilated(
        x, w, window_strides=(1,), padding=[(pad_l, pad_r)],
        dimension_numbers=("NCH", "OIH", "NCH"))
    return out + b[None, :, None]


def _bn_eval_ref(x, g, beta, m, v, eps=1e-5):
    return (x - m[None, :, None]) / jnp.sqrt(v[None, :, None] + eps) \
        * g[None, :, None] + beta[None, :, None]


def _residual_block_ref(x, w1, b1, g1, beta1, m1, v1,
                        w2, b2, g2, beta2, m2, v2, eps=1e-5):
    identity = x
    out = _conv1d_same_ref(x, w1, b1)
    out = jnp.maximum(_bn_eval_ref(out, g1, beta1, m1, v1, eps), 0.0)
    out = _conv1d_same_ref(out, w2, b2)
    out = _bn_eval_ref(out, g2, beta2, m2, v2, eps)
    out = out + identity
    return jnp.maximum(out, 0.0)


if __name__ == "__main__":
    # Small shapes consistent with the module (downsample=None => C_in == C_out).
    # N=6 deliberately doesn't divide the tile -> exercises batch padding.
    N, C, L, K = 6, 8, 128, 3
    key = jax.random.PRNGKey(0)
    ks = jax.random.split(key, 12)

    x = jax.random.normal(ks[0], (N, C, L), jnp.float32)

    w1 = jax.random.normal(ks[1], (C, C, K), jnp.float32) * 0.2
    b1 = jax.random.normal(ks[2], (C,), jnp.float32) * 0.1
    g1 = 1.0 + 0.1 * jax.random.normal(ks[3], (C,), jnp.float32)
    beta1 = 0.1 * jax.random.normal(ks[4], (C,), jnp.float32)
    m1 = 0.05 * jax.random.normal(ks[5], (C,), jnp.float32)
    v1 = 1.0 + 0.1 * jnp.abs(jax.random.normal(ks[6], (C,), jnp.float32))

    w2 = jax.random.normal(ks[7], (C, C, K), jnp.float32) * 0.2
    b2 = jax.random.normal(ks[8], (C,), jnp.float32) * 0.1
    g2 = 1.0 + 0.1 * jax.random.normal(ks[9], (C,), jnp.float32)
    beta2 = 0.1 * jax.random.normal(ks[10], (C,), jnp.float32)
    m2 = 0.05 * jax.random.normal(ks[11], (C,), jnp.float32)
    v2 = 1.0 + 0.1 * jnp.abs(jax.random.normal(ks[0], (C,), jnp.float32))

    ref = _residual_block_ref(x, w1, b1, g1, beta1, m1, v1,
                              w2, b2, g2, beta2, m2, v2)

    # Default tiling (large blocks, single-chunk inner loop at this tiny N).
    out = residual_block(x, w1, b1, g1, beta1, m1, v1,
                         w2, b2, g2, beta2, m2, v2)
    out = jax.block_until_ready(out)
    assert out.shape == ref.shape == (N, C, L)
    assert jnp.allclose(out, ref, atol=1e-4, rtol=1e-4), \
        f"f32 default-tiling max abs err {jnp.max(jnp.abs(out - ref))}"

    # Forced small tiling: exercises multi-chunk inner loop + 2 grid steps.
    out_s = residual_block(x, w1, b1, g1, beta1, m1, v1,
                           w2, b2, g2, beta2, m2, v2,
                           target_chunk_lanes=256, target_block_lanes=1024)
    out_s = jax.block_until_ready(out_s)
    assert jnp.allclose(out_s, ref, atol=1e-4, rtol=1e-4), \
        f"f32 small-tiling max abs err {jnp.max(jnp.abs(out_s - ref))}"

    # bf16 MXU operands (v6e/v7x fast path), f32 accumulation/epilogue.
    out_bf16 = residual_block(x, w1, b1, g1, beta1, m1, v1,
                              w2, b2, g2, beta2, m2, v2,
                              mxu_dtype=jnp.bfloat16)
    out_bf16 = jax.block_until_ready(out_bf16)
    assert jnp.allclose(out_bf16, ref, atol=1e-1, rtol=1e-1), \
        f"bf16 path max abs err {jnp.max(jnp.abs(out_bf16 - ref))}"

    print("KERNEL_OK")
</pallas_src>

<mosaic_0001>
module attributes {stable_mosaic.version = 11 : i64} {
  func.func @kernel(%arg0: i32, %arg1: memref<1x8x512xf32, #tpu.memory_space<vmem>>, %arg2: memref<8x24xf32, #tpu.memory_space<vmem>>, %arg3: memref<8x1xf32, #tpu.memory_space<vmem>>, %arg4: memref<8x24xf32, #tpu.memory_space<vmem>>, %arg5: memref<8x1xf32, #tpu.memory_space<vmem>>, %arg6: memref<1x8x512xf32, #tpu.memory_space<vmem>>) attributes {dimension_semantics = [#tpu.dimension_semantics<parallel>], iteration_bounds = array<i64: 2>, scalar_prefetch = 0 : i64, scratch_operands = 0 : i64, tpu.core_type = #tpu.core_type<tc>, window_params = [{transform_indices = @transform_0, window_bounds = array<i64: 1, 8, 512>}, {pipeline_mode = #tpu.pipeline_mode<synchronous>, transform_indices = @transform_1, window_bounds = array<i64: 8, 24>}, {pipeline_mode = #tpu.pipeline_mode<synchronous>, transform_indices = @transform_2, window_bounds = array<i64: 8, 1>}, {pipeline_mode = #tpu.pipeline_mode<synchronous>, transform_indices = @transform_3, window_bounds = array<i64: 8, 24>}, {pipeline_mode = #tpu.pipeline_mode<synchronous>, transform_indices = @transform_4, window_bounds = array<i64: 8, 1>}, {transform_indices = @transform_5, window_bounds = array<i64: 1, 8, 512>}]} {
    %0 = tpu.iota {dimensions = array<i32: 1>} : vector<8x512xi32>
    %c128_i32 = arith.constant 128 : i32
    %c0_i32 = arith.constant 0 : i32
    %1 = arith.cmpi eq, %c128_i32, %c0_i32 : i32
    %c1_i32 = arith.constant 1 : i32
    %2 = arith.select %1, %c1_i32, %c128_i32 : i32
    %3 = vector.broadcast %2 : i32 to vector<8x512xi32>
    %4 = arith.remsi %0, %3 : vector<8x512xi32>
    %c0_i32_0 = arith.constant 0 : i32
    %5 = vector.broadcast %c0_i32_0 : i32 to vector<8x512xi32>
    %6 = arith.cmpi ne, %4, %5 : vector<8x512xi32>
    %c0_i32_1 = arith.constant 0 : i32
    %7 = vector.broadcast %c0_i32_1 : i32 to vector<8x512xi32>
    %8 = arith.cmpi slt, %4, %7 : vector<8x512xi32>
    %c0_i32_2 = arith.constant 0 : i32
    %9 = arith.cmpi slt, %2, %c0_i32_2 : i32
    %10 = vector.broadcast %9 : i1 to vector<8x512xi1>
    %11 = vector.broadcast %10 : vector<8x512xi1> to vector<8x512xi1>
    %12 = arith.xori %8, %11 : vector<8x512xi1>
    %13 = arith.andi %12, %6 : vector<8x512xi1>
    %14 = vector.broadcast %2 : i32 to vector<8x512xi32>
    %15 = arith.addi %4, %14 : vector<8x512xi32>
    %16 = arith.select %13, %15, %4 : vector<8x512xi1>, vector<8x512xi32>
    %c-1_i32 = arith.constant -1 : i32
    %17 = vector.broadcast %c-1_i32 : i32 to vector<8x512xi32>
    %18 = arith.addi %16, %17 : vector<8x512xi32>
    %c0_i32_3 = arith.constant 0 : i32
    %19 = vector.broadcast %c0_i32_3 : i32 to vector<8x512xi32>
    %20 = arith.cmpi sge, %18, %19 : vector<8x512xi32>
    %c128_i32_4 = arith.constant 128 : i32
    %21 = vector.broadcast %c128_i32_4 : i32 to vector<8x512xi32>
    %22 = arith.cmpi slt, %18, %21 : vector<8x512xi32>
    %23 = arith.andi %20, %22 : vector<8x512xi1>
    %24 = arith.extui %23 : vector<8x512xi1> to vector<8x512xi32>
    %25 = arith.sitofp %24 : vector<8x512xi32> to vector<8x512xf32>
    %c1_i32_5 = arith.constant 1 : i32
    %26 = vector.broadcast %c1_i32_5 : i32 to vector<8x512xi32>
    %27 = arith.addi %16, %26 : vector<8x512xi32>
    %c0_i32_6 = arith.constant 0 : i32
    %28 = vector.broadcast %c0_i32_6 : i32 to vector<8x512xi32>
    %29 = arith.cmpi sge, %27, %28 : vector<8x512xi32>
    %c128_i32_7 = arith.constant 128 : i32
    %30 = vector.broadcast %c128_i32_7 : i32 to vector<8x512xi32>
    %31 = arith.cmpi slt, %27, %30 : vector<8x512xi32>
    %32 = arith.andi %29, %31 : vector<8x512xi1>
    %33 = arith.extui %32 : vector<8x512xi1> to vector<8x512xi32>
    %34 = arith.sitofp %33 : vector<8x512xi32> to vector<8x512xf32>
    %c0 = arith.constant 0 : index
    %c0_8 = arith.constant 0 : index
    %35 = vector.load %arg2[%c0, %c0_8] : memref<8x24xf32, #tpu.memory_space<vmem>>, vector<8x24xf32>
    %c0_9 = arith.constant 0 : index
    %c0_10 = arith.constant 0 : index
    %36 = vector.load %arg4[%c0_9, %c0_10] : memref<8x24xf32, #tpu.memory_space<vmem>>, vector<8x24xf32>
    %c0_11 = arith.constant 0 : index
    %c0_12 = arith.constant 0 : index
    %37 = vector.load %arg3[%c0_11, %c0_12] : memref<8x1xf32, #tpu.memory_space<vmem>>, vector<8x1xf32>
    %38 = vector.shape_cast %37 : vector<8x1xf32> to vector<8x1xf32>
    %39 = vector.broadcast %38 : vector<8x1xf32> to vector<8x512xf32>
    %c0_13 = arith.constant 0 : index
    %c0_14 = arith.constant 0 : index
    %40 = vector.load %arg5[%c0_13, %c0_14] : memref<8x1xf32, #tpu.memory_space<vmem>>, vector<8x1xf32>
    %41 = vector.shape_cast %40 : vector<8x1xf32> to vector<8x1xf32>
    %42 = vector.broadcast %41 : vector<8x1xf32> to vector<8x512xf32>
    %c0_i32_15 = arith.constant 0 : i32
    %43 = arith.index_cast %c0_i32_15 : i32 to index
    %c0_16 = arith.constant 0 : index
    %c0_17 = arith.constant 0 : index
    %44 = vector.load %arg1[%43, %c0_16, %c0_17] : memref<1x8x512xf32, #tpu.memory_space<vmem>>, vector<1x8x512xf32>
    %45 = vector.shape_cast %44 : vector<1x8x512xf32> to vector<8x512xf32>
    %c1_i32_18 = arith.constant 1 : i32
    %46 = tpu.dynamic_rotate %45 by %c1_i32_18 dim 1 : vector<8x512xf32>, i32 -> vector<8x512xf32>
    %47 = arith.mulf %46, %25 : vector<8x512xf32>
    %c511_i32 = arith.constant 511 : i32
    %48 = tpu.dynamic_rotate %45 by %c511_i32 dim 1 : vector<8x512xf32>, i32 -> vector<8x512xf32>
    %49 = arith.mulf %48, %34 : vector<8x512xf32>
    %50 = tpu.concatenate %47, %45, %49 in 0 : vector<8x512xf32>, vector<8x512xf32>, vector<8x512xf32> -> vector<24x512xf32>
    %cst = arith.constant dense<0.000000e+00> : vector<8x512xf32>
    %51 = tpu.matmul %35, %50, %cst {dimension_numbers = #tpu.dot_dimension_numbers<[1], [0], [0], [1], [0, 0, 1, 1], [], []>} : vector<8x24xf32>, vector<24x512xf32>, vector<8x512xf32> -> vector<8x512xf32>
    %52 = arith.addf %51, %39 : vector<8x512xf32>
    %cst_19 = arith.constant 0.000000e+00 : f32
    %53 = vector.broadcast %cst_19 : f32 to vector<8x512xf32>
    %54 = arith.maximumf %52, %53 : vector<8x512xf32>
    %c1_i32_20 = arith.constant 1 : i32
    %55 = tpu.dynamic_rotate %54 by %c1_i32_20 dim 1 : vector<8x512xf32>, i32 -> vector<8x512xf32>
    %56 = arith.mulf %55, %25 : vector<8x512xf32>
    %c511_i32_21 = arith.constant 511 : i32
    %57 = tpu.dynamic_rotate %54 by %c511_i32_21 dim 1 : vector<8x512xf32>, i32 -> vector<8x512xf32>
    %58 = arith.mulf %57, %34 : vector<8x512xf32>
    %59 = tpu.concatenate %56, %54, %58 in 0 : vector<8x512xf32>, vector<8x512xf32>, vector<8x512xf32> -> vector<24x512xf32>
    %cst_22 = arith.constant dense<0.000000e+00> : vector<8x512xf32>
    %60 = tpu.matmul %36, %59, %cst_22 {dimension_numbers = #tpu.dot_dimension_numbers<[1], [0], [0], [1], [0, 0, 1, 1], [], []>} : vector<8x24xf32>, vector<24x512xf32>, vector<8x512xf32> -> vector<8x512xf32>
    %61 = arith.addf %60, %42 : vector<8x512xf32>
    %62 = arith.addf %61, %45 : vector<8x512xf32>
    %cst_23 = arith.constant 0.000000e+00 : f32
    %63 = vector.broadcast %cst_23 : f32 to vector<8x512xf32>
    %64 = arith.maximumf %62, %63 : vector<8x512xf32>
    %65 = arith.index_cast %c0_i32_15 : i32 to index
    %c0_24 = arith.constant 0 : index
    %c0_25 = arith.constant 0 : index
    %66 = vector.load %arg6[%65, %c0_24, %c0_25] : memref<1x8x512xf32, #tpu.memory_space<vmem>>, vector<1x8x512xf32>
    %67 = vector.shape_cast %66 : vector<1x8x512xf32> to vector<8x512xf32>
    %68 = vector.shape_cast %64 : vector<8x512xf32> to vector<1x8x512xf32>
    tpu.vector_store %arg6[%65, %c0_24, %c0_25], %68 {strides = array<i32>} : memref<1x8x512xf32, #tpu.memory_space<vmem>>, vector<1x8x512xf32>,
    %c1_i32_26 = arith.constant 1 : i32
    return
  }
  func.func @transform_0(%arg0: i32) -> (i32, i32, i32) {
    %c0_i32 = arith.constant 0 : i32
    %c0_i32_0 = arith.constant 0 : i32
    %c0_i32_1 = arith.constant 0 : i32
    return %arg0, %c0_i32, %c0_i32_0 : i32, i32, i32
  }
  func.func @transform_1(%arg0: i32) -> (i32, i32) {
    %c0_i32 = arith.constant 0 : i32
    %c0_i32_0 = arith.constant 0 : i32
    %c0_i32_1 = arith.constant 0 : i32
    return %c0_i32, %c0_i32_0 : i32, i32
  }
  func.func @transform_2(%arg0: i32) -> (i32, i32) {
    %c0_i32 = arith.constant 0 : i32
    %c0_i32_0 = arith.constant 0 : i32
    %c0_i32_1 = arith.constant 0 : i32
    return %c0_i32, %c0_i32_0 : i32, i32
  }
  func.func @transform_3(%arg0: i32) -> (i32, i32) {
    %c0_i32 = arith.constant 0 : i32
    %c0_i32_0 = arith.constant 0 : i32
    %c0_i32_1 = arith.constant 0 : i32
    return %c0_i32, %c0_i32_0 : i32, i32
  }
  func.func @transform_4(%arg0: i32) -> (i32, i32) {
    %c0_i32 = arith.constant 0 : i32
    %c0_i32_0 = arith.constant 0 : i32
    %c0_i32_1 = arith.constant 0 : i32
    return %c0_i32, %c0_i32_0 : i32, i32
  }
  func.func @transform_5(%arg0: i32) -> (i32, i32, i32) {
    %c0_i32 = arith.constant 0 : i32
    %c0_i32_0 = arith.constant 0 : i32
    %c0_i32_1 = arith.constant 0 : i32
    return %arg0, %c0_i32, %c0_i32_0 : i32, i32, i32
  }
}

</mosaic_0001>

<llo_original>
// kernel: tpu_custom_call.1
$region0: #{tpu_custom_call.1}
  #allocation0 [shape = 'u32[]', space=smem, size = 0x4, offset = 0x4, fixed_abs, tag = 'smem constant byte address 0x4 - core index']
  #allocation1 [shape = 'u32[144,128]{1,0:T(1,128)}', space=vmem, size = 0x12000, scoped, tag = 'internal scratch']
  %s0 = inlined_call_operand.hbm [shape: f32[2,8,512], index: 0, kind: input, shape index: {}]
  %s1 = inlined_call_operand.vmem [shape: f32[8,24], index: 1, kind: input, shape index: {}]
  %s2 = inlined_call_operand.vmem [shape: f32[8,1], index: 2, kind: input, shape index: {}]
  %s3 = inlined_call_operand.vmem [shape: f32[8,24], index: 3, kind: input, shape index: {}]
  %s4 = inlined_call_operand.vmem [shape: f32[8,1], index: 4, kind: input, shape index: {}]
  %s5 = inlined_call_operand.hbm [shape: f32[2,8,512], index: 5, kind: output, shape index: {}]
  %s6 = sld [smem:[#allocation0]]
  $region57: #{tpu_custom_call.1} parent=0
    _
  %s8 = ssub.s32 1, %s6
  %s9 = scalar_select 0, %s8, %s6
  $region1: #{tpu_custom_call.1} parent=0
    #allocation2 [shape = 'u8[32768]{0}', space=vmem, size = 0x8000, scoped, tag = 'input window, operand 0']
    #allocation3 [shape = 's32[2]{0}', space=sflag, size = 0x8, scoped, tag = 'scoped memory for tpu_custom_call.1']
    #allocation4 [shape = 's32[2]{0}', space=sflag, size = 0x8, scoped, tag = 'scoped memory for tpu_custom_call.1']
    #allocation5 [shape = 'u8[32768]{0}', space=vmem, size = 0x8000, scoped, tag = 'output window, operand 0']
    %10 = vsyncpa [#allocation3], 0
    %s11 = scalar_lea.sflag [#allocation3], 1
    %12 = vsyncpa %s11, 0
    %13 = vsyncpa [#allocation4], 0
    %s14 = scalar_lea.sflag [#allocation4], 1
    %15 = vsyncpa %s14, 0
    loop: start=0, step=1, limit=4
    $region2: #{tpu_custom_call.1} parent=1 // loop_pre_header
      _
    $region3: #{tpu_custom_call.1} parent=1 // loop_header
      %s17 = sphi 0, %s21
      %p18 = scmp.ge.s32.totalorder %s17, 4
      %s27 = sphi 0, %s29
      %s30 = sphi 0, %s27
      %s31 = sphi 0, %s30
      %s47 = sphi 0, %s31
      %s51 = sphi 0, %s51
      %s53 = sphi 0, %s51
      %s54 = sphi 0, %s53
      %s68 = sphi 0, %s54
      %s72 = sphi 0, %s72
      %s74 = sphi 0, %s72
      %s75 = sphi 0, %s74
      %s89 = sphi 0, %s75
      %s93 = sphi 0, %s93
      %s95 = sphi 0, %s93
      %s96 = sphi 0, %s95
      %s110 = sphi 0, %s96
      %s114 = sphi 0, %s114
      %s116 = sphi 0, %s114
      %s117 = sphi 0, %s116
      %s131 = sphi 0, %s117
      %s137 = sphi 0, %s139
      %s140 = sphi 0, %s137
      %s141 = sphi 0, %s140
      %s157 = sphi 0, %s141
    $region4: #{tpu_custom_call.1} parent=1 // loop_header_branch
      %20 = sbr.rel (%p18) target = $region8
    $region5: #{tpu_custom_call.1} parent=1 // loop_body
      %s22 = ssub.s32 %s17, 1
      %s23 = ssub.s32 %s17, 2
      %s24 = sadd.s32 %s17, 1
      %s25 = ssub.s32 %s17, %s24
      %p26 = scmp.eq.s32.totalorder %s25, 0
      %s28 = sadd.s32 %s27, 1
      %s29 = scalar_select %p26, %s27, %s28
      %p32 = pneg %p26
      %p33 = scmp.eq.s32.totalorder %s17, 1
      %p34 = por %p32, %p33
      %p35 = scmp.ne.s32.totalorder %s27, %s30
      %p36 = scmp.eq.s32.totalorder %s17, 0
      %p37 = por %p35, %p36
      %p38 = scmp.ne.s32.totalorder %s27, %s30
      %p39 = scmp.eq.s32.totalorder %s22, 1
      %p40 = por %p38, %p39
      %p41 = scmp.ne.s32.totalorder %s30, %s31
      %p42 = scmp.eq.s32.totalorder %s22, 0
      %p43 = por %p41, %p42
      %p44 = scmp.ne.s32.totalorder %s30, %s31
      %p45 = scmp.eq.s32.totalorder %s23, 1
      %p46 = por %p44, %p45
      %p48 = scmp.ne.s32.totalorder %s31, %s47
      %p49 = scmp.eq.s32.totalorder %s23, 0
      %p50 = por %p48, %p49
      %s52 = sadd.s32 %s51, 1
      %p55 = scmp.eq.s32.totalorder %s17, 1
      %p56 = scmp.ne.s32.totalorder %s51, %s53
      %p57 = scmp.eq.s32.totalorder %s17, 0
      %p58 = por %p56, %p57
      %p59 = scmp.ne.s32.totalorder %s51, %s53
      %p60 = scmp.eq.s32.totalorder %s22, 1
      %p61 = por %p59, %p60
      %p62 = scmp.ne.s32.totalorder %s53, %s54
      %p63 = scmp.eq.s32.totalorder %s22, 0
      %p64 = por %p62, %p63
      %p65 = scmp.ne.s32.totalorder %s53, %s54
      %p66 = scmp.eq.s32.totalorder %s23, 1
      %p67 = por %p65, %p66
      %p69 = scmp.ne.s32.totalorder %s54, %s68
      %p70 = scmp.eq.s32.totalorder %s23, 0
      %p71 = por %p69, %p70
      %s73 = sadd.s32 %s72, 1
      %p76 = scmp.eq.s32.totalorder %s17, 1
      %p77 = scmp.ne.s32.totalorder %s72, %s74
      %p78 = scmp.eq.s32.totalorder %s17, 0
      %p79 = por %p77, %p78
      %p80 = scmp.ne.s32.totalorder %s72, %s74
      %p81 = scmp.eq.s32.totalorder %s22, 1
      %p82 = por %p80, %p81
      %p83 = scmp.ne.s32.totalorder %s74, %s75
      %p84 = scmp.eq.s32.totalorder %s22, 0
      %p85 = por %p83, %p84
      %p86 = scmp.ne.s32.totalorder %s74, %s75
      %p87 = scmp.eq.s32.totalorder %s23, 1
      %p88 = por %p86, %p87
      %p90 = scmp.ne.s32.totalorder %s75, %s89
      %p91 = scmp.eq.s32.totalorder %s23, 0
      %p92 = por %p90, %p91
      %s94 = sadd.s32 %s93, 1
      %p97 = scmp.eq.s32.totalorder %s17, 1
      %p98 = scmp.ne.s32.totalorder %s93, %s95
      %p99 = scmp.eq.s32.totalorder %s17, 0
      %p100 = por %p98, %p99
      %p101 = scmp.ne.s32.totalorder %s93, %s95
      %p102 = scmp.eq.s32.totalorder %s22, 1
      %p103 = por %p101, %p102
      %p104 = scmp.ne.s32.totalorder %s95, %s96
      %p105 = scmp.eq.s32.totalorder %s22, 0
      %p106 = por %p104, %p105
      %p107 = scmp.ne.s32.totalorder %s95, %s96
      %p108 = scmp.eq.s32.totalorder %s23, 1
      %p109 = por %p107, %p108
      %p111 = scmp.ne.s32.totalorder %s96, %s110
      %p112 = scmp.eq.s32.totalorder %s23, 0
      %p113 = por %p111, %p112
      %s115 = sadd.s32 %s114, 1
      %p118 = scmp.eq.s32.totalorder %s17, 1
      %p119 = scmp.ne.s32.totalorder %s114, %s116
      %p120 = scmp.eq.s32.totalorder %s17, 0
      %p121 = por %p119, %p120
      %p122 = scmp.ne.s32.totalorder %s114, %s116
      %p123 = scmp.eq.s32.totalorder %s22, 1
      %p124 = por %p122, %p123
      %p125 = scmp.ne.s32.totalorder %s116, %s117
      %p126 = scmp.eq.s32.totalorder %s22, 0
      %p127 = por %p125, %p126
      %p128 = scmp.ne.s32.totalorder %s116, %s117
      %p129 = scmp.eq.s32.totalorder %s23, 1
      %p130 = por %p128, %p129
      %p132 = scmp.ne.s32.totalorder %s117, %s131
      %p133 = scmp.eq.s32.totalorder %s23, 0
      %p134 = por %p132, %p133
      %s135 = ssub.s32 %s17, %s24
      %p136 = scmp.eq.s32.totalorder %s135, 0
      %s138 = sadd.s32 %s137, 1
      %s139 = scalar_select %p136, %s137, %s138
      %p142 = pneg %p136
      %p143 = scmp.eq.s32.totalorder %s17, 1
      %p144 = por %p142, %p143
      %p145 = scmp.ne.s32.totalorder %s137, %s140
      %p146 = scmp.eq.s32.totalorder %s17, 0
      %p147 = por %p145, %p146
      %p148 = scmp.ne.s32.totalorder %s137, %s140
      %p149 = scmp.eq.s32.totalorder %s22, 1
      %p150 = por %p148, %p149
      %p151 = scmp.ne.s32.totalorder %s140, %s141
      %p152 = scmp.eq.s32.totalorder %s22, 0
      %p153 = por %p151, %p152
      %p154 = scmp.ne.s32.totalorder %s140, %s141
      %p155 = scmp.eq.s32.totalorder %s23, 1
      %p156 = por %p154, %p155
      %p158 = scmp.ne.s32.totalorder %s141, %s157
      %p159 = scmp.eq.s32.totalorder %s23, 0
      %p160 = por %p158, %p159
      %p161 = scmp.le.s32.totalorder 1, %s17
      %p162 = scmp.lt.s32.totalorder %s17, 3
      %p163 = pnand %p161, %p162
      %p164 = pneg %p163
      // Predicated region
      $region9: #{tpu_custom_call.1} parent=5 // pred_check
        _
      $region10: #{tpu_custom_call.1} parent=5 // pred_check_branch
        %166 = sbr.rel (%p163) target = $region12
      $region11: #{tpu_custom_call.1} parent=5 // pred_region
        %s167 = ssub.s32 %s17, 1
        // Predicated region
        $region13: #{tpu_custom_call.1} parent=11 // pred_check
          %p168 = pneg %p64
        $region14: #{tpu_custom_call.1} parent=11 // pred_check_branch
          %170 = sbr.rel (%p168) target = $region16
        $region15: #{tpu_custom_call.1} parent=11 // pred_region
          _
        $region16: #{tpu_custom_call.1} parent=11 // pred_fallthru
          _
        // Predicated region
        $region17: #{tpu_custom_call.1} parent=11 // pred_check
          %p171 = pneg %p85
        $region18: #{tpu_custom_call.1} parent=11 // pred_check_branch
          %173 = sbr.rel (%p171) target = $region20
        $region19: #{tpu_custom_call.1} parent=11 // pred_region
          _
        $region20: #{tpu_custom_call.1} parent=11 // pred_fallthru
          _
        // Predicated region
        $region21: #{tpu_custom_call.1} parent=11 // pred_check
          %p174 = pneg %p106
        $region22: #{tpu_custom_call.1} parent=11 // pred_check_branch
          %176 = sbr.rel (%p174) target = $region24
        $region23: #{tpu_custom_call.1} parent=11 // pred_region
          _
        $region24: #{tpu_custom_call.1} parent=11 // pred_fallthru
          _
        // Predicated region
        $region25: #{tpu_custom_call.1} parent=11 // pred_check
          %p177 = pneg %p127
        $region26: #{tpu_custom_call.1} parent=11 // pred_check_branch
          %179 = sbr.rel (%p177) target = $region28
        $region27: #{tpu_custom_call.1} parent=11 // pred_region
          _
        $region28: #{tpu_custom_call.1} parent=11 // pred_fallthru
          _
      $region12: #{tpu_custom_call.1} parent=5 // pred_fallthru
        _
      %p180 = scmp.lt.s32.totalorder %s17, 2
      // Predicated region
      $region29: #{tpu_custom_call.1} parent=5 // pred_check
        %p181 = pneg %p180
      $region30: #{tpu_custom_call.1} parent=5 // pred_check_branch
        %183 = sbr.rel (%p181) target = $region32
      $region31: #{tpu_custom_call.1} parent=5 // pred_region
        // Predicated region
        $region33: #{tpu_custom_call.1} parent=31 // pred_check
          %p184 = pneg %p37
        $region34: #{tpu_custom_call.1} parent=31 // pred_check_branch
          %186 = sbr.rel (%p184) target = $region36
        $region35: #{tpu_custom_call.1} parent=31 // pred_region
          %s187 = sand.u32 %s27, 1
          %s188 = scalar_lea.sflag [#allocation3], %s187
          %s189 = sand.u32 %s27, 1
          %s190 = smul.addr %s189, 32
          %s191 = scalar_lea.vmem [#allocation2], %s190
          %s193 = ssub.s32 512, 512
          %194 = vsyncadd %s188, %s193
          %s195 = smul.addr %s17, 4
          %s196 = smul.addr %s195, 128
          %s197 = scalar_lea.hbm %s0, %s196
          %s199 = sshll.u32 %s191, 4
          %s200 = int_to_ptr.vmem [resolvable:$true] %s199
          %202 = dma.hbm_to_vmem [thread:$0]  %s197, 512, %s200, %s188
        $region36: #{tpu_custom_call.1} parent=31 // pred_fallthru
          _
      $region32: #{tpu_custom_call.1} parent=5 // pred_fallthru
        _
      %p203 = scmp.le.s32.totalorder 1, %s17
      %p204 = scmp.lt.s32.totalorder %s17, 3
      %p205 = pnand %p203, %p204
      %p206 = pneg %p205
      // Predicated region
      $region37: #{tpu_custom_call.1} parent=5 // pred_check
        _
      $region38: #{tpu_custom_call.1} parent=5 // pred_check_branch
        %208 = sbr.rel (%p205) target = $region40
      $region39: #{tpu_custom_call.1} parent=5 // pred_region
        %s209 = ssub.s32 %s17, 1
        %s210 = sand.u32 %s30, 1
        %s211 = scalar_lea.sflag [#allocation3], %s210
        %s212 = sand.u32 %s30, 1
        %s213 = smul.addr %s212, 32
        %s214 = scalar_lea.vmem [#allocation2], %s213
        // Predicated region
        $region41: #{tpu_custom_call.1} parent=39 // pred_check
          %p215 = pneg %p43
        $region42: #{tpu_custom_call.1} parent=39 // pred_check_branch
          %217 = sbr.rel (%p215) target = $region44
        $region43: #{tpu_custom_call.1} parent=39 // pred_region
          %218 = dma.done %s211, 512
        $region44: #{tpu_custom_call.1} parent=39 // pred_fallthru
          _
        %s219 = sand.u32 %s30, 1
        %s220 = scalar_lea.sflag [#allocation3], %s219
        %s221 = sand.u32 %s30, 1
        %s222 = smul.addr %s221, 32
        %s223 = scalar_lea.vmem [#allocation2], %s222
        %p224 = pneg %p43
        %p225 = pneg %p40
        %p226 = pneg %p64
        %p227 = pneg %p61
        %p228 = pneg %p85
        %p229 = pneg %p82
        %p230 = pneg %p106
        %p231 = pneg %p103
        %p232 = pneg %p127
        %p233 = pneg %p124
        %p234 = pneg %p153
        %p235 = pneg %p150
        %s236 = sand.u32 %s140, 1
        %s237 = scalar_lea.sflag [#allocation4], %s236
        %s238 = sand.u32 %s140, 1
        %s239 = smul.addr %s238, 32
        %s240 = scalar_lea.vmem [#allocation5], %s239
        %v241 = vlaneseq
        %v242 = vand.u32 %v241, 127
        %v243 = vadd.s32 %v242, 128
        %v244 = vadd.s32 %v242, 256
        %v245 = vadd.s32 %v242, 384
        %vm246 = vcmp.lt.s32.totalorder %v242, 0
        %v247 = vsub.s32 0, %v242
        %v248 = vsel %vm246, %v247, %v242
        %v249 = vshrl.u32 %v248, 7
        %v250 = vand.u32 %v248, 127
        %v251 = vsub.s32 0, %v250
        %v252 = vsel %vm246, %v251, %v250
        %vm253 = vcmp.lt.s32.totalorder %v243, 0
        %v254 = vsub.s32 0, %v243
        %v255 = vsel %vm253, %v254, %v243
        %v256 = vshrl.u32 %v255, 7
        %v257 = vand.u32 %v255, 127
        %v258 = vsub.s32 0, %v257
        %v259 = vsel %vm253, %v258, %v257
        %vm260 = vcmp.lt.s32.totalorder %v244, 0
        %v261 = vsub.s32 0, %v244
        %v262 = vsel %vm260, %v261, %v244
        %v263 = vshrl.u32 %v262, 7
        %v264 = vand.u32 %v262, 127
        %v265 = vsub.s32 0, %v264
        %v266 = vsel %vm260, %v265, %v264
        %vm267 = vcmp.lt.s32.totalorder %v245, 0
        %v268 = vsub.s32 0, %v245
        %v269 = vsel %vm267, %v268, %v245
        %v270 = vshrl.u32 %v269, 7
        %v271 = vand.u32 %v269, 127
        %v272 = vsub.s32 0, %v271
        %v273 = vsel %vm267, %v272, %v271
        %vm274 = vcmp.ne.s32.totalorder %v252, 0
        %vm275 = vcmp.ne.s32.totalorder %v259, 0
        %vm276 = vcmp.ne.s32.totalorder %v266, 0
        %vm277 = vcmp.ne.s32.totalorder %v273, 0
        %vm278 = vcmp.lt.s32.totalorder %v252, 0
        %vm279 = vcmp.lt.s32.totalorder %v259, 0
        %vm280 = vcmp.lt.s32.totalorder %v266, 0
        %vm281 = vcmp.lt.s32.totalorder %v273, 0
        %vm282 = vmand %vm278, %vm274
        %vm283 = vmand %vm279, %vm275
        %vm284 = vmand %vm280, %vm276
        %vm285 = vmand %vm281, %vm277
        %v286 = vadd.s32 %v252, 128
        %v287 = vadd.s32 %v259, 128
        %v288 = vadd.s32 %v266, 128
        %v289 = vadd.s32 %v273, 128
        %v290 = vsel %vm282, %v286, %v252
        %v291 = vsel %vm283, %v287, %v259
        %v292 = vsel %vm284, %v288, %v266
        %v293 = vsel %vm285, %v289, %v273
        %v294 = vadd.s32 %v290, 4294967295
        %v295 = vadd.s32 %v291, 4294967295
        %v296 = vadd.s32 %v292, 4294967295
        %v297 = vadd.s32 %v293, 4294967295
        %vm298 = vcmp.ge.s32.totalorder %v294, 0
        %vm299 = vcmp.ge.s32.totalorder %v295, 0
        %vm300 = vcmp.ge.s32.totalorder %v296, 0
        %vm301 = vcmp.ge.s32.totalorder %v297, 0
        %vm302 = vcmp.lt.s32.totalorder %v294, 128
        %vm303 = vcmp.lt.s32.totalorder %v295, 128
        %vm304 = vcmp.lt.s32.totalorder %v296, 128
        %vm305 = vcmp.lt.s32.totalorder %v297, 128
        %vm306 = vmand %vm298, %vm302
        %vm307 = vmand %vm299, %vm303
        %vm308 = vmand %vm300, %vm304
        %vm309 = vmand %vm301, %vm305
        %v310 = vsel %vm306, 1, 0
        %v311 = vsel %vm307, 1, 0
        %v312 = vsel %vm308, 1, 0
        %v313 = vsel %vm309, 1, 0
        %v314 = vcvt.s32.f32 %v310
        %v315 = vcvt.s32.f32 %v311
        %v316 = vcvt.s32.f32 %v312
        %v317 = vcvt.s32.f32 %v313
        %v318 = vadd.s32 %v290, 1
        %v319 = vadd.s32 %v291, 1
        %v320 = vadd.s32 %v292, 1
        %v321 = vadd.s32 %v293, 1
        %vm322 = vcmp.ge.s32.totalorder %v318, 0
        %vm323 = vcmp.ge.s32.totalorder %v319, 0
        %vm324 = vcmp.ge.s32.totalorder %v320, 0
        %vm325 = vcmp.ge.s32.totalorder %v321, 0
        %vm326 = vcmp.lt.s32.totalorder %v318, 128
        %vm327 = vcmp.lt.s32.totalorder %v319, 128
        %vm328 = vcmp.lt.s32.totalorder %v320, 128
        %vm329 = vcmp.lt.s32.totalorder %v321, 128
        %vm330 = vmand %vm322, %vm326
        %vm331 = vmand %vm323, %vm327
        %vm332 = vmand %vm324, %vm328
        %vm333 = vmand %vm325, %vm329
        %v334 = vsel %vm330, 1, 0
        %v335 = vsel %vm331, 1, 0
        %v336 = vsel %vm332, 1, 0
        %v337 = vsel %vm333, 1, 0
        %v338 = vcvt.s32.f32 %v334
        %v339 = vcvt.s32.f32 %v335
        %v340 = vcvt.s32.f32 %v336
        %v341 = vcvt.s32.f32 %v337
        %v342 = vld [vmem:[%s1] sm:$0xff]
        %v343 = vld [vmem:[%s3] sm:$0xff]
        %v344 = vld [vmem:[%s2] sm:$0xff]
        %346 = vset.pattern.permute.xlu0 0
        %347 = vperm.xlu0 %346, %v344
        %v348 = vpop.permute.xlu0 %347
        %v350 = vld [vmem:[%s4] sm:$0xff]
        %352 = vset.pattern.permute.xlu0 0
        %353 = vperm.xlu0 %352, %v350
        %v354 = vpop.permute.xlu0 %353
        %v356 = vld [vmem:[%s214] sm:$0xff]
        %v357 = vld [vmem:[%s214 + $0x8] sm:$0xff]
        %v358 = vld [vmem:[%s214 + $0x10] sm:$0xff]
        %v359 = vld [vmem:[%s214 + $0x18] sm:$0xff]
        %360 = vrot.lane.b32.xlu0 %v356, 1
        %v361 = vpop.permute.xlu0 %360
        %362 = vrot.lane.b32.xlu0 %v357, 1
        %v363 = vpop.permute.xlu0 %362
        %364 = vrot.lane.b32.xlu0 %v358, 1
        %v365 = vpop.permute.xlu0 %364
        %366 = vrot.lane.b32.xlu0 %v359, 1
        %v367 = vpop.permute.xlu0 %366
        %vm368 = vcmp.lt.s32.totalorder %v242, 1
        %v369 = vsel %vm368, %v365, %v367
        %v370 = vsel %vm368, %v363, %v365
        %v371 = vsel %vm368, %v361, %v363
        %v372 = vsel %vm368, %v367, %v361
        %v373 = vmul.f32 %v372, %v314
        %v374 = vmul.f32 %v371, %v315
        %v375 = vmul.f32 %v370, %v316
        %v376 = vmul.f32 %v369, %v317
        %377 = vrot.lane.b32.xlu0 %v356, 127
        %v378 = vpop.permute.xlu0 %377
        %379 = vrot.lane.b32.xlu0 %v357, 127
        %v380 = vpop.permute.xlu0 %379
        %381 = vrot.lane.b32.xlu0 %v358, 127
        %v382 = vpop.permute.xlu0 %381
        %383 = vrot.lane.b32.xlu0 %v359, 127
        %v384 = vpop.permute.xlu0 %383
        %vm385 = vcmp.lt.s32.totalorder %v242, 127
        %v386 = vsel %vm385, %v382, %v384
        %v387 = vsel %vm385, %v380, %v382
        %v388 = vsel %vm385, %v378, %v380
        %v389 = vsel %vm385, %v384, %v378
        %v390 = vmul.f32 %v388, %v338
        %v391 = vmul.f32 %v387, %v339
        %v392 = vmul.f32 %v386, %v340
        %v393 = vmul.f32 %v389, %v341
        %vm394 = vcmask 195584
        %v396 = vsel %vm394, %v342, 0
        %398 = vmatprep.subr.mxu0 0.0
        %399 = vmatpush1.msra.mxu0 0.0
        %400 = vmatprep.subr.mxu0 0.0
        %401 = vmatpush1.msra.mxu0 0.0
        %402 = vmatprep.subr.mxu0 0.0
        %403 = vmatpush1.msra.mxu0 0.0
        %404 = vmatprep.subr.mxu0 0.0
        %405 = vmatpush1.msra.mxu0 0.0
        %406 = vmatprep.subr.mxu0 0.0
        %407 = vmatpush1.msra.mxu0 0.0
        %408 = vmatprep.subr.mxu0 0.0
        %409 = vmatpush1.msra.mxu0 0.0
        %410 = vmatprep.subr.mxu0 0.0
        %411 = vmatpush1.msra.mxu0 0.0
        %412 = vmatprep.subr.mxu0 0.0
        %413 = vmatpush1.msra.mxu0 0.0
        %414 = vmatprep.subr.mxu0 0.0
        %415 = vmatpush1.msra.mxu0 0.0
        %416 = vmatprep.subr.mxu0 0.0
        %417 = vmatpush1.msra.mxu0 0.0
        %418 = vmatprep.subr.mxu0 0.0
        %419 = vmatpush1.msra.mxu0 0.0
        %420 = vmatprep.subr.mxu0 0.0
        %421 = vmatpush1.msra.mxu0 0.0
        %422 = vmatprep.subr.mxu0 0.0
        %423 = vmatpush1.msra.mxu0 0.0
        %424 = vmatprep.subr.mxu0 %v391
        %425 = vmatpush1.msra.mxu0 %v390
        %426 = vmatprep.subr.mxu0 %v357
        %427 = vmatpush1.msra.mxu0 %v356
        %428 = vmatprep.subr.mxu0 %v374
        %429 = vmatpush1.msra.mxu0 %v373
        %430 = vmatprep.subr.mxu0 0.0
        %431 = vmatpush2.msra.mxu0 0.0
        %432 = vmatprep.subr.mxu0 0.0
        %433 = vmatpush2.msra.mxu0 0.0
        %434 = vmatprep.subr.mxu0 0.0
        %435 = vmatpush2.msra.mxu0 0.0
        %436 = vmatprep.subr.mxu0 0.0
        %437 = vmatpush2.msra.mxu0 0.0
        %438 = vmatprep.subr.mxu0 0.0
        %439 = vmatpush2.msra.mxu0 0.0
        %440 = vmatprep.subr.mxu0 0.0
        %441 = vmatpush2.msra.mxu0 0.0
        %442 = vmatprep.subr.mxu0 0.0
        %443 = vmatpush2.msra.mxu0 0.0
        %444 = vmatprep.subr.mxu0 0.0
        %445 = vmatpush2.msra.mxu0 0.0
        %446 = vmatprep.subr.mxu0 0.0
        %447 = vmatpush2.msra.mxu0 0.0
        %448 = vmatprep.subr.mxu0 0.0
        %449 = vmatpush2.msra.mxu0 0.0
        %450 = vmatprep.subr.mxu0 0.0
        %451 = vmatpush2.msra.mxu0 0.0
        %452 = vmatprep.subr.mxu0 0.0
        %453 = vmatpush2.msra.mxu0 0.0
        %454 = vmatprep.subr.mxu0 0.0
        %455 = vmatpush2.msra.mxu0 0.0
        %456 = vmatprep.subr.mxu0 0.0
        %457 = vmatpush2.msra.mxu0 0.0
        %458 = vmatprep.subr.mxu0 0.0
        %459 = vmatpush2.msra.mxu0 0.0
        %460 = vmatprep.subr.mxu0 0.0
        %461 = vmatpush2.msra.mxu0 0.0
        %462 = vmatprep.mubr.f32.mxu0 0.0
        %463 = vmatmul.mubr.f32.gmra.mxu0 %v396
        %v464 = vpop.f32.mrf.mxu0
        %v465 = vadd.f32 %v348, %v464
        %v466 = vpop.f32.mrf.mxu0
        %v467 = vadd.f32 %v348, %v466
        %468 = vdwg.mxu0
        %469 = vmatprep.subr.mxu0 0.0
        %470 = vmatpush1.msra.mxu0 0.0
        %471 = vmatprep.subr.mxu0 0.0
        %472 = vmatpush1.msra.mxu0 0.0
        %473 = vmatprep.subr.mxu0 0.0
        %474 = vmatpush1.msra.mxu0 0.0
        %475 = vmatprep.subr.mxu0 0.0
        %476 = vmatpush1.msra.mxu0 0.0
        %477 = vmatprep.subr.mxu0 0.0
        %478 = vmatpush1.msra.mxu0 0.0
        %479 = vmatprep.subr.mxu0 0.0
        %480 = vmatpush1.msra.mxu0 0.0
        %481 = vmatprep.subr.mxu0 0.0
        %482 = vmatpush1.msra.mxu0 0.0
        %483 = vmatprep.subr.mxu0 0.0
        %484 = vmatpush1.msra.mxu0 0.0
        %485 = vmatprep.subr.mxu0 0.0
        %486 = vmatpush1.msra.mxu0 0.0
        %487 = vmatprep.subr.mxu0 0.0
        %488 = vmatpush1.msra.mxu0 0.0
        %489 = vmatprep.subr.mxu0 0.0
        %490 = vmatpush1.msra.mxu0 0.0
        %491 = vmatprep.subr.mxu0 0.0
        %492 = vmatpush1.msra.mxu0 0.0
        %493 = vmatprep.subr.mxu0 0.0
        %494 = vmatpush1.msra.mxu0 0.0
        %495 = vmatprep.subr.mxu0 %v393
        %496 = vmatpush1.msra.mxu0 %v392
        %497 = vmatprep.subr.mxu0 %v359
        %498 = vmatpush1.msra.mxu0 %v358
        %499 = vmatprep.subr.mxu0 %v376
        %500 = vmatpush1.msra.mxu0 %v375
        %501 = vmatprep.subr.mxu0 0.0
        %502 = vmatpush2.msra.mxu0 0.0
        %503 = vmatprep.subr.mxu0 0.0
        %504 = vmatpush2.msra.mxu0 0.0
        %505 = vmatprep.subr.mxu0 0.0
        %506 = vmatpush2.msra.mxu0 0.0
        %507 = vmatprep.subr.mxu0 0.0
        %508 = vmatpush2.msra.mxu0 0.0
        %509 = vmatprep.subr.mxu0 0.0
        %510 = vmatpush2.msra.mxu0 0.0
        %511 = vmatprep.subr.mxu0 0.0
        %512 = vmatpush2.msra.mxu0 0.0
        %513 = vmatprep.subr.mxu0 0.0
        %514 = vmatpush2.msra.mxu0 0.0
        %515 = vmatprep.subr.mxu0 0.0
        %516 = vmatpush2.msra.mxu0 0.0
        %517 = vmatprep.subr.mxu0 0.0
        %518 = vmatpush2.msra.mxu0 0.0
        %519 = vmatprep.subr.mxu0 0.0
        %520 = vmatpush2.msra.mxu0 0.0
        %521 = vmatprep.subr.mxu0 0.0
        %522 = vmatpush2.msra.mxu0 0.0
        %523 = vmatprep.subr.mxu0 0.0
        %524 = vmatpush2.msra.mxu0 0.0
        %525 = vmatprep.subr.mxu0 0.0
        %526 = vmatpush2.msra.mxu0 0.0
        %527 = vmatprep.subr.mxu0 0.0
        %528 = vmatpush2.msra.mxu0 0.0
        %529 = vmatprep.subr.mxu0 0.0
        %530 = vmatpush2.msra.mxu0 0.0
        %531 = vmatprep.subr.mxu0 0.0
        %532 = vmatpush2.msra.mxu0 0.0
        %533 = vmatprep.mubr.f32.mxu0 0.0
        %534 = vmatmul.mubr.f32.gmra.mxu0 %v396
        %v535 = vpop.f32.mrf.mxu0
        %v536 = vadd.f32 %v348, %v535
        %v537 = vpop.f32.mrf.mxu0
        %v538 = vadd.f32 %v348, %v537
        %539 = vdwg.mxu0
        %v540 = vmax.f32 %v465, 0.0
        %v541 = vmax.f32 %v467, 0.0
        %v542 = vmax.f32 %v536, 0.0
        %v543 = vmax.f32 %v538, 0.0
        %544 = vrot.lane.b32.xlu0 %v540, 1
        %v545 = vpop.permute.xlu0 %544
        %546 = vrot.lane.b32.xlu0 %v541, 1
        %v547 = vpop.permute.xlu0 %546
        %548 = vrot.lane.b32.xlu0 %v542, 1
        %v549 = vpop.permute.xlu0 %548
        %550 = vrot.lane.b32.xlu0 %v543, 1
        %v551 = vpop.permute.xlu0 %550
        %v552 = vsel %vm368, %v549, %v551
        %v553 = vsel %vm368, %v547, %v549
        %v554 = vsel %vm368, %v545, %v547
        %v555 = vsel %vm368, %v551, %v545
        %v556 = vmul.f32 %v555, %v314
        %v557 = vmul.f32 %v554, %v315
        %v558 = vmul.f32 %v553, %v316
        %v559 = vmul.f32 %v552, %v317
        %560 = vrot.lane.b32.xlu0 %v540, 127
        %v561 = vpop.permute.xlu0 %560
        %562 = vrot.lane.b32.xlu0 %v541, 127
        %v563 = vpop.permute.xlu0 %562
        %564 = vrot.lane.b32.xlu0 %v542, 127
        %v565 = vpop.permute.xlu0 %564
        %566 = vrot.lane.b32.xlu0 %v543, 127
        %v567 = vpop.permute.xlu0 %566
        %v568 = vsel %vm385, %v565, %v567
        %v569 = vsel %vm385, %v563, %v565
        %v570 = vsel %vm385, %v561, %v563
        %v571 = vsel %vm385, %v567, %v561
        %v572 = vmul.f32 %v570, %v338
        %v573 = vmul.f32 %v569, %v339
        %v574 = vmul.f32 %v568, %v340
        %v575 = vmul.f32 %v571, %v341
        %v577 = vsel %vm394, %v343, 0
        %579 = vmatprep.subr.mxu0 0.0
        %580 = vmatpush1.msra.mxu0 0.0
        %581 = vmatprep.subr.mxu0 0.0
        %582 = vmatpush1.msra.mxu0 0.0
        %583 = vmatprep.subr.mxu0 0.0
        %584 = vmatpush1.msra.mxu0 0.0
        %585 = vmatprep.subr.mxu0 0.0
        %586 = vmatpush1.msra.mxu0 0.0
        %587 = vmatprep.subr.mxu0 0.0
        %588 = vmatpush1.msra.mxu0 0.0
        %589 = vmatprep.subr.mxu0 0.0
        %590 = vmatpush1.msra.mxu0 0.0
        %591 = vmatprep.subr.mxu0 0.0
        %592 = vmatpush1.msra.mxu0 0.0
        %593 = vmatprep.subr.mxu0 0.0
        %594 = vmatpush1.msra.mxu0 0.0
        %595 = vmatprep.subr.mxu0 0.0
        %596 = vmatpush1.msra.mxu0 0.0
        %597 = vmatprep.subr.mxu0 0.0
        %598 = vmatpush1.msra.mxu0 0.0
        %599 = vmatprep.subr.mxu0 0.0
        %600 = vmatpush1.msra.mxu0 0.0
        %601 = vmatprep.subr.mxu0 0.0
        %602 = vmatpush1.msra.mxu0 0.0
        %603 = vmatprep.subr.mxu0 0.0
        %604 = vmatpush1.msra.mxu0 0.0
        %605 = vmatprep.subr.mxu0 %v573
        %606 = vmatpush1.msra.mxu0 %v572
        %607 = vmatprep.subr.mxu0 %v541
        %608 = vmatpush1.msra.mxu0 %v540
        %609 = vmatprep.subr.mxu0 %v557
        %610 = vmatpush1.msra.mxu0 %v556
        %611 = vmatprep.subr.mxu0 0.0
        %612 = vmatpush2.msra.mxu0 0.0
        %613 = vmatprep.subr.mxu0 0.0
        %614 = vmatpush2.msra.mxu0 0.0
        %615 = vmatprep.subr.mxu0 0.0
        %616 = vmatpush2.msra.mxu0 0.0
        %617 = vmatprep.subr.mxu0 0.0
        %618 = vmatpush2.msra.mxu0 0.0
        %619 = vmatprep.subr.mxu0 0.0
        %620 = vmatpush2.msra.mxu0 0.0
        %621 = vmatprep.subr.mxu0 0.0
        %622 = vmatpush2.msra.mxu0 0.0
        %623 = vmatprep.subr.mxu0 0.0
        %624 = vmatpush2.msra.mxu0 0.0
        %625 = vmatprep.subr.mxu0 0.0
        %626 = vmatpush2.msra.mxu0 0.0
        %627 = vmatprep.subr.mxu0 0.0
        %628 = vmatpush2.msra.mxu0 0.0
        %629 = vmatprep.subr.mxu0 0.0
        %630 = vmatpush2.msra.mxu0 0.0
        %631 = vmatprep.subr.mxu0 0.0
        %632 = vmatpush2.msra.mxu0 0.0
        %633 = vmatprep.subr.mxu0 0.0
        %634 = vmatpush2.msra.mxu0 0.0
        %635 = vmatprep.subr.mxu0 0.0
        %636 = vmatpush2.msra.mxu0 0.0
        %637 = vmatprep.subr.mxu0 0.0
        %638 = vmatpush2.msra.mxu0 0.0
        %639 = vmatprep.subr.mxu0 0.0
        %640 = vmatpush2.msra.mxu0 0.0
        %641 = vmatprep.subr.mxu0 0.0
        %642 = vmatpush2.msra.mxu0 0.0
        %643 = vmatprep.mubr.f32.mxu0 0.0
        %644 = vmatmul.mubr.f32.gmra.mxu0 %v577
        %v645 = vpop.f32.mrf.mxu0
        %v646 = vadd.f32 %v354, %v645
        %v647 = vpop.f32.mrf.mxu0
        %v648 = vadd.f32 %v354, %v647
        %649 = vdwg.mxu0
        %650 = vmatprep.subr.mxu0 0.0
        %651 = vmatpush1.msra.mxu0 0.0
        %652 = vmatprep.subr.mxu0 0.0
        %653 = vmatpush1.msra.mxu0 0.0
        %654 = vmatprep.subr.mxu0 0.0
        %655 = vmatpush1.msra.mxu0 0.0
        %656 = vmatprep.subr.mxu0 0.0
        %657 = vmatpush1.msra.mxu0 0.0
        %658 = vmatprep.subr.mxu0 0.0
        %659 = vmatpush1.msra.mxu0 0.0
        %660 = vmatprep.subr.mxu0 0.0
        %661 = vmatpush1.msra.mxu0 0.0
        %662 = vmatprep.subr.mxu0 0.0
        %663 = vmatpush1.msra.mxu0 0.0
        %664 = vmatprep.subr.mxu0 0.0
        %665 = vmatpush1.msra.mxu0 0.0
        %666 = vmatprep.subr.mxu0 0.0
        %667 = vmatpush1.msra.mxu0 0.0
        %668 = vmatprep.subr.mxu0 0.0
        %669 = vmatpush1.msra.mxu0 0.0
        %670 = vmatprep.subr.mxu0 0.0
        %671 = vmatpush1.msra.mxu0 0.0
        %672 = vmatprep.subr.mxu0 0.0
        %673 = vmatpush1.msra.mxu0 0.0
        %674 = vmatprep.subr.mxu0 0.0
        %675 = vmatpush1.msra.mxu0 0.0
        %676 = vmatprep.subr.mxu0 %v575
        %677 = vmatpush1.msra.mxu0 %v574
        %678 = vmatprep.subr.mxu0 %v543
        %679 = vmatpush1.msra.mxu0 %v542
        %680 = vmatprep.subr.mxu0 %v559
        %681 = vmatpush1.msra.mxu0 %v558
        %682 = vmatprep.subr.mxu0 0.0
        %683 = vmatpush2.msra.mxu0 0.0
        %684 = vmatprep.subr.mxu0 0.0
        %685 = vmatpush2.msra.mxu0 0.0
        %686 = vmatprep.subr.mxu0 0.0
        %687 = vmatpush2.msra.mxu0 0.0
        %688 = vmatprep.subr.mxu0 0.0
        %689 = vmatpush2.msra.mxu0 0.0
        %690 = vmatprep.subr.mxu0 0.0
        %691 = vmatpush2.msra.mxu0 0.0
        %692 = vmatprep.subr.mxu0 0.0
        %693 = vmatpush2.msra.mxu0 0.0
        %694 = vmatprep.subr.mxu0 0.0
        %695 = vmatpush2.msra.mxu0 0.0
        %696 = vmatprep.subr.mxu0 0.0
        %697 = vmatpush2.msra.mxu0 0.0
        %698 = vmatprep.subr.mxu0 0.0
        %699 = vmatpush2.msra.mxu0 0.0
        %700 = vmatprep.subr.mxu0 0.0
        %701 = vmatpush2.msra.mxu0 0.0
        %702 = vmatprep.subr.mxu0 0.0
        %703 = vmatpush2.msra.mxu0 0.0
        %704 = vmatprep.subr.mxu0 0.0
        %705 = vmatpush2.msra.mxu0 0.0
        %706 = vmatprep.subr.mxu0 0.0
        %707 = vmatpush2.msra.mxu0 0.0
        %708 = vmatprep.subr.mxu0 0.0
        %709 = vmatpush2.msra.mxu0 0.0
        %710 = vmatprep.subr.mxu0 0.0
        %711 = vmatpush2.msra.mxu0 0.0
        %712 = vmatprep.subr.mxu0 0.0
        %713 = vmatpush2.msra.mxu0 0.0
        %714 = vmatprep.mubr.f32.mxu0 0.0
        %715 = vmatmul.mubr.f32.gmra.mxu0 %v577
        %v716 = vpop.f32.mrf.mxu0
        %v717 = vadd.f32 %v354, %v716
        %v718 = vpop.f32.mrf.mxu0
        %v719 = vadd.f32 %v354, %v718
        %720 = vdwg.mxu0
        %v721 = vadd.f32 %v646, %v356
        %v722 = vadd.f32 %v648, %v357
        %v723 = vadd.f32 %v717, %v358
        %v724 = vadd.f32 %v719, %v359
        %v725 = vmax.f32 %v721, 0.0
        %v726 = vmax.f32 %v722, 0.0
        %v727 = vmax.f32 %v723, 0.0
        %v728 = vmax.f32 %v724, 0.0
        %729 = vst [vmem:[%s240] sm:$0xff] %v725
        %730 = vst [vmem:[%s240 + $0x8] sm:$0xff] %v726
        %731 = vst [vmem:[%s240 + $0x10] sm:$0xff] %v727
        %732 = vst [vmem:[%s240 + $0x18] sm:$0xff] %v728
        %s733 = sand.u32 %s140, 1
        %s734 = scalar_lea.sflag [#allocation4], %s733
        %s735 = sand.u32 %s140, 1
        %s736 = smul.addr %s735, 32
        %s737 = scalar_lea.vmem [#allocation5], %s736
        // Predicated region
        $region45: #{tpu_custom_call.1} parent=39 // pred_check
          %p738 = pneg %p150
        $region46: #{tpu_custom_call.1} parent=39 // pred_check_branch
          %740 = sbr.rel (%p738) target = $region48
        $region47: #{tpu_custom_call.1} parent=39 // pred_region
          %s742 = ssub.s32 512, 512
          %743 = vsyncadd %s734, %s742
          %s744 = smul.addr %s22, 4
          %s745 = smul.addr %s744, 128
          %s746 = scalar_lea.hbm %s5, %s745
          %s748 = sshll.u32 %s737, 4
          %s749 = int_to_ptr.vmem [resolvable:$true] %s748
          %751 = dma.vmem_to_hbm [thread:$0]  %s749, 512, %s746, %s734
        $region48: #{tpu_custom_call.1} parent=39 // pred_fallthru
          _
      $region40: #{tpu_custom_call.1} parent=5 // pred_fallthru
        _
      %p752 = scmp.le.s32.totalorder 2, %s17
      // Predicated region
      $region49: #{tpu_custom_call.1} parent=5 // pred_check
        %p753 = pneg %p752
      $region50: #{tpu_custom_call.1} parent=5 // pred_check_branch
        %755 = sbr.rel (%p753) target = $region52
      $region51: #{tpu_custom_call.1} parent=5 // pred_region
        %s756 = ssub.s32 %s17, 2
        // Predicated region
        $region53: #{tpu_custom_call.1} parent=51 // pred_check
          %p757 = pneg %p156
        $region54: #{tpu_custom_call.1} parent=51 // pred_check_branch
          %759 = sbr.rel (%p757) target = $region56
        $region55: #{tpu_custom_call.1} parent=51 // pred_region
          %s760 = sand.u32 %s141, 1
          %s761 = scalar_lea.sflag [#allocation4], %s760
          %s762 = sand.u32 %s141, 1
          %s763 = smul.addr %s762, 32
          %s764 = scalar_lea.vmem [#allocation5], %s763
          %765 = dma.done %s761, 512
        $region56: #{tpu_custom_call.1} parent=51 // pred_fallthru
          _
      $region52: #{tpu_custom_call.1} parent=5 // pred_fallthru
        _
    $region6: #{tpu_custom_call.1} parent=1 // loop_footer
      %s21 = sadd.s32 1, %s17
    $region7: #{tpu_custom_call.1} parent=1 // loop_footer_branch
      %16 = sbr.rel target = $region3
    $region8: #{tpu_custom_call.1} parent=1 // loop_exit
      _
    %766 = vsyncpa [#allocation3], 1
    %s767 = scalar_lea.sflag [#allocation3], 1
    %768 = vsyncpa %s767, 1
    %769 = vsyncpa [#allocation4], 1
    %s770 = scalar_lea.sflag [#allocation4], 1
    %771 = vsyncpa %s770, 1

</llo_original>
